<compile_context>
chip_gen: v5e
topology: v5e:2x2
jax: 0.10.0
libtpu: 0.0.40
codegen_flags: <defaults>
</compile_context>

<pallas_src>
import math

import jax
import jax.numpy as jnp
from jax.experimental import pallas as pl
from jax.experimental.pallas import tpu as pltpu

_LANES = 128
_MAX_LANE_DIM = 1024          # cap for the non-128 (full-extent) lane factorization
_TARGET_STEPS = 8             # prefer >= 8 grid steps (even) for v7x megacore balance
_MIN_BLOCK_PAIR_BYTES = 1 << 20   # keep (in+out) blocks >= ~1 MiB so ~0.35us/step amortizes
_MIN_KERNEL_ELEMS = 8 * 128   # below one (8,128) tile the fused XLA path is strictly faster


def _normalize_index_kernel(max_value: float, out_dtype):
    """Kernel body closing over the (static) max value and output dtype."""

    def kernel(x_ref, o_ref):
        # Widen in-kernel (cheap VPU work, fully hidden under DMA); true divide for
        # exact parity with PyTorch `input / max` (kept per perf review).
        o_ref[...] = (x_ref[...].astype(jnp.float32) / jnp.float32(max_value)).astype(out_dtype)

    return kernel


def _round_up(n: int, m: int) -> int:
    return ((n + m - 1) // m) * m


def _cdiv(a: int, b: int) -> int:
    return -(-a // b)


def _sublane_multiple(dtype) -> int:
    # (8,128) tiles for 32-bit dtypes, (16,128) for 16-bit, (32,128) for 8-bit.
    return max(8, 32 // jnp.dtype(dtype).itemsize)


def _pick_lane_dim(total: int) -> int:
    """Lane (last) dim for the free 2-D factorization of the flat element count."""
    if total % _LANES == 0:
        return _LANES
    best = 1
    d = 1
    while d * d <= total:
        if total % d == 0:
            for c in (d, total // d):
                if best < c <= _MAX_LANE_DIM:
                    best = c
        d += 1
    return best


def _max_block_pair_bytes() -> int:
    """Per-generation (in+out) single-buffer block budget.

    v7x (64 MiB VMEM/TC, ~3.2 TB/s HBM): bigger blocks amortize the per-step cost;
    4 MiB/side double-buffered (16 MiB) still fits its 32 MiB default scoped limit.
    v5e/v6e (128 MiB VMEM): 2 MiB/side already sits at the measured roofline plateau
    and keeps the double-buffered footprint (8 MiB) under v5e's 16 MiB default limit.
    """
    try:
        info = pltpu.get_tpu_info()
        vmem = getattr(info, "vmem_capacity_bytes", None)
        if vmem is not None and vmem <= 80 * (1 << 20):   # v7x-class TensorCore
            return 8 << 20
    except Exception:
        pass
    return 4 << 20


def normalize_index(x: jax.Array, max_value: int, out_dtype=jnp.float32) -> jax.Array:
    """Pallas implementation of NormalizeIndex.forward: x / max_value (float32 default)."""
    orig_shape = x.shape
    total = math.prod(orig_shape)

    # Demote 64-bit inputs (LongTensor analog) to 32-bit; exactness matches PyTorch's
    # own float32 promotion (both are exact only for indices < 2^24).
    if jnp.dtype(x.dtype).itemsize > 4:
        x = x.astype(jnp.int32 if jnp.issubdtype(x.dtype, jnp.integer) else jnp.float32)

    def _xla_fallback():
        return (x.astype(jnp.float32) / jnp.float32(max_value)).astype(out_dtype).reshape(orig_shape)

    if total < _MIN_KERNEL_ELEMS:
        return _xla_fallback()

    lanes = _pick_lane_dim(total)
    if lanes < 8:
        # Pathological (near-prime) element count: a tiny lane dim would waste >16x VMEM.
        return _xla_fallback()
    rows = total // lanes

    # Free reshape of a contiguous row-major array: no extra HBM traffic.
    x2d = x.reshape(rows, lanes)

    sub = _sublane_multiple(x.dtype)
    padded_lanes = _round_up(lanes, _LANES)          # VMEM lane padding for non-128 lane dims
    in_item = jnp.dtype(x.dtype).itemsize
    out_item = jnp.dtype(out_dtype).itemsize
    bytes_per_row = padded_lanes * (in_item + out_item)

    pair_budget = _max_block_pair_bytes()
    rows_budget = max(sub, (pair_budget // bytes_per_row) // sub * sub)
    min_tile_rows = max(sub, _round_up(_cdiv(_MIN_BLOCK_PAIR_BYTES, bytes_per_row), sub))

    # Step count: respect the VMEM budget, prefer >= TARGET even steps on big inputs
    # (balanced split across v7x' two TensorCores), never shrink blocks below ~1 MiB.
    steps_vmem = _cdiv(rows, rows_budget)
    steps = max(steps_vmem, _TARGET_STEPS)
    steps = min(steps, max(1, rows // min_tile_rows))
    steps = max(steps, steps_vmem)
    if steps > 1 and steps % 2:
        steps += 1

    if steps <= 1:
        tile_rows, steps = rows, 1                    # full-extent block (always legal)
    else:
        # Balanced split; last block may be ragged (masked by Pallas, harmless over-read).
        tile_rows = min(_round_up(_cdiv(rows, steps), sub), rows_budget)
        steps = _cdiv(rows, tile_rows)

    block_pair_bytes = tile_rows * bytes_per_row
    vmem_limit = min(48 << 20, max(16 << 20, int(2.5 * block_pair_bytes) + (2 << 20)))

    out2d = pl.pallas_call(
        _normalize_index_kernel(float(max_value), out_dtype),
        out_shape=jax.ShapeDtypeStruct((rows, lanes), out_dtype),
        grid_spec=pltpu.PrefetchScalarGridSpec(
            num_scalar_prefetch=0,
            grid=(steps,),
            in_specs=[pl.BlockSpec((tile_rows, lanes), lambda i: (i, 0))],
            out_specs=pl.BlockSpec((tile_rows, lanes), lambda i: (i, 0)),
        ),
        compiler_params=pltpu.CompilerParams(
            dimension_semantics=("parallel",),
            vmem_limit_bytes=vmem_limit,
        ),
        cost_estimate=pl.CostEstimate(
            flops=2 * total,
            transcendentals=0,
            bytes_accessed=total * (in_item + out_item),
        ),
    )(x2d)

    return out2d.reshape(orig_shape)


if __name__ == "__main__":
    # NormalizeIndex has no learned parameters; `max` is a constructor arg.
    MAX = 512  # e.g. VQ-VAE codebook size

    key = jax.random.PRNGKey(0)
    k0, k1, k2, k3 = jax.random.split(key, 4)

    # Primary case: NCHW quantized indices, B=2, C=4, H=W=16 (total % 128 == 0).
    x = jax.random.randint(k0, (2, 4, 16, 16), 0, MAX, dtype=jnp.int32)
    y = jax.block_until_ready(normalize_index(x, MAX))
    ref = x.astype(jnp.float32) / float(MAX)
    assert y.shape == x.shape and y.dtype == jnp.float32
    assert jnp.allclose(y, ref, rtol=1e-6, atol=1e-6), "primary case mismatch"

    # Non-power-of-two max + element count not a multiple of 128 (zero-copy, full-extent
    # lane-dim path; previously this shape triggered the slice+concat tail).
    x_tail = jax.random.randint(k1, (1, 1, 70, 70), 0, 313, dtype=jnp.int32)
    y_tail = jax.block_until_ready(normalize_index(x_tail, 313))
    ref_tail = x_tail.astype(jnp.float32) / float(313)
    assert jnp.allclose(y_tail, ref_tail, rtol=1e-6, atol=1e-6), "lane-ragged case mismatch"

    # Multi-step grid with a ragged (masked) last row block and rows not a multiple of 8.
    x_big = jax.random.randint(k2, (2, 2, 1501, 128), 0, MAX, dtype=jnp.int32)
    y_big = jax.block_until_ready(normalize_index(x_big, MAX))
    ref_big = x_big.astype(jnp.float32) / float(MAX)
    assert jnp.allclose(y_big, ref_big, rtol=1e-6, atol=1e-6), "multi-step ragged case mismatch"

    # Narrow-dtype input path (int16 indices; halves HBM read traffic).
    x16 = jax.random.randint(k3, (2, 4, 16, 32), 0, MAX, dtype=jnp.int16)
    y16 = jax.block_until_ready(normalize_index(x16, MAX))
    ref16 = x16.astype(jnp.float32) / float(MAX)
    assert jnp.allclose(y16, ref16, rtol=1e-6, atol=1e-6), "int16 case mismatch"

    # Opt-in bf16 output mode (semantics deviation from PyTorch; f32 remains default).
    ybf = jax.block_until_ready(normalize_index(x, MAX, out_dtype=jnp.bfloat16))
    assert ybf.dtype == jnp.bfloat16
    assert jnp.allclose(ybf.astype(jnp.float32), ref, rtol=1e-2, atol=1e-2), "bf16 case mismatch"

    # Tiny-input XLA fallback path.
    x_small = jax.random.randint(k0, (2, 3, 5, 7), 0, MAX, dtype=jnp.int32)
    y_small = jax.block_until_ready(normalize_index(x_small, MAX))
    assert jnp.allclose(y_small, x_small.astype(jnp.float32) / float(MAX),
                        rtol=1e-6, atol=1e-6), "fallback case mismatch"

    print("KERNEL_OK")
</pallas_src>

<mosaic_0001>
module attributes {stable_mosaic.version = 11 : i64} {
  func.func @kernel(%arg0: i32, %arg1: memref<16x128xi32, #tpu.memory_space<vmem>>, %arg2: memref<16x128xf32, #tpu.memory_space<vmem>>) attributes {dimension_semantics = [#tpu.dimension_semantics<parallel>], iteration_bounds = array<i64: 1>, scalar_prefetch = 0 : i64, scratch_operands = 0 : i64, tpu.core_type = #tpu.core_type<tc>, window_params = [{transform_indices = @transform_0, window_bounds = array<i64: 16, 128>}, {transform_indices = @transform_1, window_bounds = array<i64: 16, 128>}]} {
    %c0 = arith.constant 0 : index
    %c0_0 = arith.constant 0 : index
    %0 = vector.load %arg1[%c0, %c0_0] : memref<16x128xi32, #tpu.memory_space<vmem>>, vector<16x128xi32>
    %1 = arith.sitofp %0 : vector<16x128xi32> to vector<16x128xf32>
    %cst = arith.constant 5.120000e+02 : f32
    %2 = vector.broadcast %cst : f32 to vector<16x128xf32>
    %3 = arith.divf %1, %2 : vector<16x128xf32>
    %c0_1 = arith.constant 0 : index
    %c0_2 = arith.constant 0 : index
    %4 = vector.load %arg2[%c0_1, %c0_2] : memref<16x128xf32, #tpu.memory_space<vmem>>, vector<16x128xf32>
    tpu.vector_store %arg2[%c0_1, %c0_2], %3 {strides = array<i32>} : memref<16x128xf32, #tpu.memory_space<vmem>>, vector<16x128xf32>,
    return
  }
  func.func @transform_0(%arg0: i32) -> (i32, i32) {
    %c0_i32 = arith.constant 0 : i32
    %c0_i32_0 = arith.constant 0 : i32
    return %arg0, %c0_i32 : i32, i32
  }
  func.func @transform_1(%arg0: i32) -> (i32, i32) {
    %c0_i32 = arith.constant 0 : i32
    %c0_i32_0 = arith.constant 0 : i32
    return %arg0, %c0_i32 : i32, i32
  }
}

</mosaic_0001>

<llo_original>
// kernel: tpu_custom_call.1
$region0: #{tpu_custom_call.1}
  #allocation0 [shape = 'u32[]', space=smem, size = 0x4, offset = 0x4, fixed_abs, tag = 'smem constant byte address 0x4 - core index']
  #allocation1 [shape = 'u32[72,128]{1,0:T(1,128)}', space=vmem, size = 0x9000, scoped, tag = 'internal scratch']
  %s0 = inlined_call_operand.hbm [shape: s32[16,128], index: 0, kind: input, shape index: {}]
  %s1 = inlined_call_operand.hbm [shape: f32[16,128], index: 1, kind: output, shape index: {}]
  %s2 = sld [smem:[#allocation0]]
  $region18: #{tpu_custom_call.1} parent=0
    _
  %s4 = ssub.s32 1, %s2
  %s5 = scalar_select 0, %s4, %s2
  $region1: #{tpu_custom_call.1} parent=0
    #allocation2 [shape = 'u8[8192]{0}', space=vmem, size = 0x2000, scoped, tag = 'input window, operand 0, single buffered']
    #allocation3 [shape = 's32[1]{0}', space=sflag, size = 0x4, scoped, tag = 'scoped memory for tpu_custom_call.1']
    #allocation4 [shape = 's32[1]{0}', space=sflag, size = 0x4, scoped, tag = 'scoped memory for tpu_custom_call.1']
    #allocation5 [shape = 'u8[8192]{0}', space=vmem, size = 0x2000, scoped, tag = 'output window, operand 0, single buffered']
    %6 = vsyncpa [#allocation3], 0
    %7 = vsyncpa [#allocation4], 0
    // Predicated region
    $region2: #{tpu_custom_call.1} parent=1 // pred_check
      _
    $region3: #{tpu_custom_call.1} parent=1 // pred_check_branch
      %9 = sbr.rel (0) target = $region5
    $region4: #{tpu_custom_call.1} parent=1 // pred_region
      %11 = vsyncadd [#allocation3], 0
      %s12 = sshll.u32 %s0, 4
      %s13 = int_to_ptr.hbm [resolvable:$true] %s12
      %s14 = sshll.u32 [#allocation2], 4
      %s15 = int_to_ptr.vmem [resolvable:$true] %s14
      %20 = dma.hbm_to_vmem [thread:$0]  %s13, 256, %s15, [#allocation3], 128, 128, 8
    $region5: #{tpu_custom_call.1} parent=1 // pred_fallthru
      _
    // Predicated region
    $region6: #{tpu_custom_call.1} parent=1 // pred_check
      _
    $region7: #{tpu_custom_call.1} parent=1 // pred_check_branch
      %22 = sbr.rel (0) target = $region9
    $region8: #{tpu_custom_call.1} parent=1 // pred_region
      %24 = dma.done [#allocation3], 256
    $region9: #{tpu_custom_call.1} parent=1 // pred_fallthru
      _
    %v25 = vld [vmem:[#allocation2] sm:$0xff]
    %v26 = vld [vmem:[#allocation2 + $0x8] sm:$0xff]
    %v27 = vcvt.s32.f32 %v25
    %v28 = vcvt.s32.f32 %v26
    %v29 = vrcp.pop 512.0
    %v30 = vmul.f32 512.0, %v29
    %v31 = vsub.f32 1.0, %v30
    %v32 = vmul.f32 %v29, %v31
    %v33 = vadd.f32 %v29, %v32
    %vm34 = vweird.f32 %v29
    %v35 = vsel %vm34, %v29, %v33
    %v36 = vmul.f32 %v27, %v35
    %v37 = vmul.f32 %v28, %v35
    %38 = vst [vmem:[#allocation5] sm:$0xff] %v36
    %39 = vst [vmem:[#allocation5 + $0x8] sm:$0xff] %v37
    // Predicated region
    $region10: #{tpu_custom_call.1} parent=1 // pred_check
      _
    $region11: #{tpu_custom_call.1} parent=1 // pred_check_branch
      %41 = sbr.rel (0) target = $region13
    $region12: #{tpu_custom_call.1} parent=1 // pred_region
      %43 = vsyncadd [#allocation4], 0
      %s44 = sshll.u32 [#allocation5], 4
      %s45 = int_to_ptr.vmem [resolvable:$true] %s44
      %s46 = sshll.u32 %s1, 4
      %s47 = int_to_ptr.hbm [resolvable:$true] %s46
      %52 = dma.vmem_to_hbm [thread:$0]  %s45, 256, %s47, [#allocation4], 128, 128, 8
    $region13: #{tpu_custom_call.1} parent=1 // pred_fallthru
      _
    // Predicated region
    $region14: #{tpu_custom_call.1} parent=1 // pred_check
      _
    $region15: #{tpu_custom_call.1} parent=1 // pred_check_branch
      %54 = sbr.rel (0) target = $region17
    $region16: #{tpu_custom_call.1} parent=1 // pred_region
      %56 = dma.done [#allocation4], 256
    $region17: #{tpu_custom_call.1} parent=1 // pred_fallthru
      _
    %57 = vsyncpa [#allocation3], 1
    %58 = vsyncpa [#allocation4], 1

</llo_original>
